<compile_context>
chip_gen: v5e
topology: v5e:2x2
jax: 0.10.0
libtpu: 0.0.40
codegen_flags: <defaults>
</compile_context>

<pallas_src>
import functools

import jax
import jax.numpy as jnp
from jax.experimental import pallas as pl
from jax.experimental.pallas import tpu as pltpu

_LANE = 128
_SUBLANE = 8
_PACK_ALIGN = 16          # row alignment inside the packed param buffer
_MIN_SPLIT_BATCH = 256    # split into >=2 grid steps above this (v7x megacore)


def _round_up(x: int, m: int) -> int:
    return ((x + m - 1) // m) * m


def prepare_params(params, compute_dtype=jnp.float32):
    """Pads + packs all weights/biases once into a single (rows, 128) buffer.

    Layout (row offsets aligned to 16 so slices are sublane-tile aligned for
    both f32 and bf16):
        [off_w1 : off_w1+in_dim , :hidden ]  w1
        [off_b1                 , :hidden ]  b1
        [off_w2 : off_w2+hidden , :hidden ]  w2
        [off_b2                 , :hidden ]  b2
        [off_w3 : off_w3+hidden , :out    ]  w3
        [off_b3                 , :out    ]  b3
    All other entries are exactly zero, so padded hidden lanes stay zero
    through the whole network (ReLU(0) = 0).
    """
    in_dim, hidden = params["w1"].shape
    out_dim = params["w3"].shape[1]
    hp = _round_up(hidden, _LANE)

    off_w1 = 0
    off_b1 = _round_up(off_w1 + in_dim, _PACK_ALIGN)
    off_w2 = _round_up(off_b1 + 1, _PACK_ALIGN)
    off_b2 = _round_up(off_w2 + hp, _PACK_ALIGN)
    off_w3 = _round_up(off_b2 + 1, _PACK_ALIGN)
    off_b3 = _round_up(off_w3 + hp, _PACK_ALIGN)
    total = _round_up(off_b3 + 1, _PACK_ALIGN)

    buf = jnp.zeros((total, hp), jnp.float32)
    buf = buf.at[off_w1:off_w1 + in_dim, :hidden].set(params["w1"])
    buf = buf.at[off_b1, :hidden].set(params["b1"].reshape(hidden))
    buf = buf.at[off_w2:off_w2 + hidden, :hidden].set(params["w2"])
    buf = buf.at[off_b2, :hidden].set(params["b2"].reshape(hidden))
    buf = buf.at[off_w3:off_w3 + hidden, :out_dim].set(params["w3"])
    buf = buf.at[off_b3, :out_dim].set(params["b3"].reshape(out_dim))
    buf = buf.astype(compute_dtype)

    dims = (in_dim, hp, out_dim, off_w1, off_b1, off_w2, off_b2, off_w3, off_b3)
    return buf, dims


def _make_kernel(in_dim, hp, out_dim, offs):
    """Fused 3-layer MLP on one (tb, in_dim) batch tile; packed weights VMEM-resident."""
    ow1, ob1, ow2, ob2, ow3, ob3 = offs

    def kernel(x_ref, w_ref, o_ref):
        wdt = w_ref.dtype
        x = x_ref[...].astype(wdt)

        w1 = w_ref[ow1:ow1 + in_dim, :]          # (in_dim, hp)
        b1 = w_ref[ob1:ob1 + 1, :]               # (1, hp)
        w2 = w_ref[ow2:ow2 + hp, :]              # (hp, hp)
        b2 = w_ref[ob2:ob2 + 1, :]               # (1, hp)
        w3 = w_ref[ow3:ow3 + hp, 0:out_dim]      # (hp, out_dim)
        b3 = w_ref[ob3:ob3 + 1, 0:out_dim]       # (1, out_dim)

        h1 = jnp.dot(x, w1, preferred_element_type=jnp.float32) + b1
        h1 = jnp.maximum(h1, 0.0)
        h2 = jnp.dot(h1.astype(wdt), w2, preferred_element_type=jnp.float32) + b2
        h2 = jnp.maximum(h2, 0.0)
        out = jnp.dot(h2.astype(wdt), w3, preferred_element_type=jnp.float32) + b3
        o_ref[...] = out.astype(o_ref.dtype)

    return kernel


@functools.partial(jax.jit, static_argnames=("dims", "block_batch"))
def cartpole_forward(state, packed, *, dims, block_batch: int = 1024):
    """Runs the fused, batch-tiled MLP Pallas kernel.

    Args:
      state:  (batch, input_dim) float32.
      packed: packed parameter buffer from prepare_params.
      dims:   static layout tuple from prepare_params.
      block_batch: max batch-tile size per grid step (multiple of 8).
    Returns:
      (batch, output_dim) float32 Q-values.
    """
    in_dim, hp, out_dim, ow1, ob1, ow2, ob2, ow3, ob3 = dims
    batch = state.shape[0]
    assert state.shape[1] == in_dim

    # Pad batch only to a sublane multiple (no-op for most large batches).
    batch8 = _round_up(batch, _SUBLANE)
    xp = state if batch8 == batch else jnp.pad(state, ((0, batch8 - batch), (0, 0)))

    # Batch tile: as large as possible to amortize per-step overhead, but make
    # sure non-trivial batches get >=2 grid steps so v7x can use both cores.
    tb = _round_up(min(block_batch, batch8), _SUBLANE)
    if batch8 >= _MIN_SPLIT_BATCH and pl.cdiv(batch8, tb) < 2:
        tb = _round_up(pl.cdiv(batch8, 2), _SUBLANE)
    grid = (pl.cdiv(batch8, tb),)

    kernel = _make_kernel(in_dim, hp, out_dim, (ow1, ob1, ow2, ob2, ow3, ob3))

    out = pl.pallas_call(
        kernel,
        out_shape=jax.ShapeDtypeStruct((batch8, out_dim), jnp.float32),
        grid=grid,
        in_specs=[
            # x: one batch tile per step (double-buffered; last block may be partial).
            pl.BlockSpec((tb, in_dim), lambda i: (i, 0)),
            # Packed params: constant block index -> single DMA, VMEM-resident.
            pl.BlockSpec(packed.shape, lambda i: (0, 0)),
        ],
        # Narrow (tb, out_dim) output block: full-row coverage, no lane padding,
        # so no 64x HBM write amplification.
        out_specs=pl.BlockSpec((tb, out_dim), lambda i: (i, 0)),
        compiler_params=pltpu.CompilerParams(
            dimension_semantics=("parallel",),
        ),
    )(xp, packed)

    return out if batch8 == batch else out[:batch]


def init_params(key, input_dim=4, hidden=32, output_dim=2):
    """Deterministic PyTorch-Linear-style (uniform +/- 1/sqrt(fan_in)) init."""
    ks = jax.random.split(key, 6)

    def linear(kw, kb, fan_in, fan_out):
        bound = 1.0 / jnp.sqrt(jnp.float32(fan_in))
        w = jax.random.uniform(kw, (fan_in, fan_out), jnp.float32, -bound, bound)
        b = jax.random.uniform(kb, (1, fan_out), jnp.float32, -bound, bound)
        return w, b

    w1, b1 = linear(ks[0], ks[1], input_dim, hidden)
    w2, b2 = linear(ks[2], ks[3], hidden, hidden)
    w3, b3 = linear(ks[4], ks[5], hidden, output_dim)
    return {"w1": w1, "b1": b1, "w2": w2, "b2": b2, "w3": w3, "b3": b3}


def _reference_forward(state, p):
    h1 = jnp.maximum(state @ p["w1"] + p["b1"], 0.0)
    h2 = jnp.maximum(h1 @ p["w2"] + p["b2"], 0.0)
    return h2 @ p["w3"] + p["b3"]


if __name__ == "__main__":
    key = jax.random.PRNGKey(0)
    k_param, k_state_small, k_state_big = jax.random.split(key, 3)

    BATCH, INPUT_DIM, HIDDEN, OUTPUT_DIM = 2, 4, 32, 2
    params = init_params(k_param, INPUT_DIM, HIDDEN, OUTPUT_DIM)

    # Pad/pack the params once (outside the per-forward jit).
    packed, dims = prepare_params(params)

    # Small (CartPole-sized) batch — latency path, grid=(1,).
    state = jax.random.normal(k_state_small, (BATCH, INPUT_DIM), jnp.float32)
    out = jax.block_until_ready(cartpole_forward(state, packed, dims=dims))
    ref = _reference_forward(state, params)
    assert out.shape == (BATCH, OUTPUT_DIM)
    assert jnp.allclose(out, ref, atol=1e-5, rtol=1e-5)

    # Larger, non-multiple-of-tile batch — exercises the multi-step grid path
    # (split into 2 grid steps for v7x megacore) and the partial-block handling.
    BIG_BATCH = 300
    state_big = jax.random.normal(k_state_big, (BIG_BATCH, INPUT_DIM), jnp.float32)
    out_big = jax.block_until_ready(cartpole_forward(state_big, packed, dims=dims))
    ref_big = _reference_forward(state_big, params)
    assert out_big.shape == (BIG_BATCH, OUTPUT_DIM)
    assert jnp.allclose(out_big, ref_big, atol=1e-5, rtol=1e-5)

    # Optional bf16 compute path (v5e/v6e large-batch win); f32 MXU accumulation,
    # looser tolerance vs. the f32 reference.
    packed_bf16, dims_bf16 = prepare_params(params, compute_dtype=jnp.bfloat16)
    out_bf16 = jax.block_until_ready(
        cartpole_forward(state_big, packed_bf16, dims=dims_bf16))
    assert out_bf16.shape == (BIG_BATCH, OUTPUT_DIM)
    assert jnp.allclose(out_bf16, ref_big, atol=5e-2, rtol=5e-2)

    print("KERNEL_OK")
</pallas_src>

<mosaic_0001>
module attributes {stable_mosaic.version = 11 : i64} {
  func.func @kernel(%arg0: i32, %arg1: memref<8x4xf32, #tpu.memory_space<vmem>>, %arg2: memref<320x128xf32, #tpu.memory_space<vmem>>, %arg3: memref<8x2xf32, #tpu.memory_space<vmem>>) attributes {dimension_semantics = [#tpu.dimension_semantics<parallel>], iteration_bounds = array<i64: 1>, scalar_prefetch = 0 : i64, scratch_operands = 0 : i64, tpu.core_type = #tpu.core_type<tc>, window_params = [{transform_indices = @transform_0, window_bounds = array<i64: 8, 4>}, {pipeline_mode = #tpu.pipeline_mode<synchronous>, transform_indices = @transform_1, window_bounds = array<i64: 320, 128>}, {transform_indices = @transform_2, window_bounds = array<i64: 8, 2>}]} {
    %c0 = arith.constant 0 : index
    %c0_0 = arith.constant 0 : index
    %0 = vector.load %arg1[%c0, %c0_0] : memref<8x4xf32, #tpu.memory_space<vmem>>, vector<8x4xf32>
    %c0_1 = arith.constant 0 : index
    %c0_2 = arith.constant 0 : index
    %1 = vector.load %arg2[%c0_1, %c0_2] : memref<320x128xf32, #tpu.memory_space<vmem>>, vector<4x128xf32>
    %c16 = arith.constant 16 : index
    %c0_3 = arith.constant 0 : index
    %2 = vector.load %arg2[%c16, %c0_3] : memref<320x128xf32, #tpu.memory_space<vmem>>, vector<1x128xf32>
    %c32 = arith.constant 32 : index
    %c0_4 = arith.constant 0 : index
    %3 = vector.load %arg2[%c32, %c0_4] : memref<320x128xf32, #tpu.memory_space<vmem>>, vector<128x128xf32>
    %c160 = arith.constant 160 : index
    %c0_5 = arith.constant 0 : index
    %4 = vector.load %arg2[%c160, %c0_5] : memref<320x128xf32, #tpu.memory_space<vmem>>, vector<1x128xf32>
    %c176 = arith.constant 176 : index
    %c0_6 = arith.constant 0 : index
    %5 = vector.load %arg2[%c176, %c0_6] : memref<320x128xf32, #tpu.memory_space<vmem>>, vector<128x2xf32>
    %c304 = arith.constant 304 : index
    %c0_7 = arith.constant 0 : index
    %6 = vector.load %arg2[%c304, %c0_7] : memref<320x128xf32, #tpu.memory_space<vmem>>, vector<1x2xf32>
    %cst = arith.constant dense<0.000000e+00> : vector<8x128xf32>
    %7 = tpu.matmul %0, %1, %cst {dimension_numbers = #tpu.dot_dimension_numbers<[1], [0], [0], [1], [0, 0, 1, 1], [], []>} : vector<8x4xf32>, vector<4x128xf32>, vector<8x128xf32> -> vector<8x128xf32>
    %8 = vector.broadcast %2 : vector<1x128xf32> to vector<8x128xf32>
    %9 = arith.addf %7, %8 : vector<8x128xf32>
    %cst_8 = arith.constant 0.000000e+00 : f32
    %10 = vector.broadcast %cst_8 : f32 to vector<8x128xf32>
    %11 = arith.maximumf %9, %10 : vector<8x128xf32>
    %cst_9 = arith.constant dense<0.000000e+00> : vector<8x128xf32>
    %12 = tpu.matmul %11, %3, %cst_9 {dimension_numbers = #tpu.dot_dimension_numbers<[1], [0], [0], [1], [0, 0, 1, 1], [], []>} : vector<8x128xf32>, vector<128x128xf32>, vector<8x128xf32> -> vector<8x128xf32>
    %13 = vector.broadcast %4 : vector<1x128xf32> to vector<8x128xf32>
    %14 = arith.addf %12, %13 : vector<8x128xf32>
    %cst_10 = arith.constant 0.000000e+00 : f32
    %15 = vector.broadcast %cst_10 : f32 to vector<8x128xf32>
    %16 = arith.maximumf %14, %15 : vector<8x128xf32>
    %cst_11 = arith.constant dense<0.000000e+00> : vector<8x2xf32>
    %17 = tpu.matmul %16, %5, %cst_11 {dimension_numbers = #tpu.dot_dimension_numbers<[1], [0], [0], [1], [0, 0, 1, 1], [], []>} : vector<8x128xf32>, vector<128x2xf32>, vector<8x2xf32> -> vector<8x2xf32>
    %18 = vector.broadcast %6 : vector<1x2xf32> to vector<8x2xf32>
    %19 = arith.addf %17, %18 : vector<8x2xf32>
    %c0_12 = arith.constant 0 : index
    %c0_13 = arith.constant 0 : index
    %20 = vector.load %arg3[%c0_12, %c0_13] : memref<8x2xf32, #tpu.memory_space<vmem>>, vector<8x2xf32>
    tpu.vector_store %arg3[%c0_12, %c0_13], %19 {strides = array<i32>} : memref<8x2xf32, #tpu.memory_space<vmem>>, vector<8x2xf32>,
    return
  }
  func.func @transform_0(%arg0: i32) -> (i32, i32) {
    %c0_i32 = arith.constant 0 : i32
    %c0_i32_0 = arith.constant 0 : i32
    return %arg0, %c0_i32 : i32, i32
  }
  func.func @transform_1(%arg0: i32) -> (i32, i32) {
    %c0_i32 = arith.constant 0 : i32
    %c0_i32_0 = arith.constant 0 : i32
    %c0_i32_1 = arith.constant 0 : i32
    return %c0_i32, %c0_i32_0 : i32, i32
  }
  func.func @transform_2(%arg0: i32) -> (i32, i32) {
    %c0_i32 = arith.constant 0 : i32
    %c0_i32_0 = arith.constant 0 : i32
    return %arg0, %c0_i32 : i32, i32
  }
}

</mosaic_0001>

<llo_original>
// kernel: cartpole_forward.1
$region0: #{cartpole_forward.1}
  #allocation0 [shape = 'u32[]', space=smem, size = 0x4, offset = 0x4, fixed_abs, tag = 'smem constant byte address 0x4 - core index']
  #allocation1 [shape = 'u32[72,128]{1,0:T(1,128)}', space=vmem, size = 0x9000, scoped, tag = 'internal scratch']
  %s0 = inlined_call_operand.vmem [shape: f32[8,4], index: 0, kind: input, shape index: {}]
  %s1 = inlined_call_operand.hbm [shape: f32[320,128], index: 1, kind: input, shape index: {}]
  %s2 = inlined_call_operand.vmem [shape: f32[8,2], index: 2, kind: output, shape index: {}]
  %s3 = sld [smem:[#allocation0]]
  $region22: #{cartpole_forward.1} parent=0
    _
  %s5 = ssub.s32 1, %s3
  %s6 = scalar_select 0, %s5, %s3
  $region1: #{cartpole_forward.1} parent=0
    #allocation2 [shape = 'u8[163840]{0}', space=vmem, size = 0x28000, scoped, tag = 'input window, operand 1, single buffered']
    #allocation3 [shape = 's32[1]{0}', space=sflag, size = 0x4, scoped, tag = 'scoped memory for cartpole_forward.1']
    %7 = vsyncpa [#allocation3], 0
    // Predicated region
    $region2: #{cartpole_forward.1} parent=1 // pred_check
      _
    $region3: #{cartpole_forward.1} parent=1 // pred_check_branch
      %9 = sbr.rel (0) target = $region5
    $region4: #{cartpole_forward.1} parent=1 // pred_region
      _
    $region5: #{cartpole_forward.1} parent=1 // pred_fallthru
      _
    // Predicated region
    $region6: #{cartpole_forward.1} parent=1 // pred_check
      _
    $region7: #{cartpole_forward.1} parent=1 // pred_check_branch
      %11 = sbr.rel (0) target = $region9
    $region8: #{cartpole_forward.1} parent=1 // pred_region
      %13 = vsyncadd [#allocation3], 0
      %s14 = sshll.u32 %s1, 4
      %s15 = int_to_ptr.hbm [resolvable:$true] %s14
      %s16 = sshll.u32 [#allocation2], 4
      %s17 = int_to_ptr.vmem [resolvable:$true] %s16
      %22 = dma.hbm_to_vmem [thread:$0]  %s15, 5120, %s17, [#allocation3], 128, 128, 8
    $region9: #{cartpole_forward.1} parent=1 // pred_fallthru
      _
    // Predicated region
    $region10: #{cartpole_forward.1} parent=1 // pred_check
      _
    $region11: #{cartpole_forward.1} parent=1 // pred_check_branch
      %24 = sbr.rel (0) target = $region13
    $region12: #{cartpole_forward.1} parent=1 // pred_region
      %26 = dma.done [#allocation3], 5120
    $region13: #{cartpole_forward.1} parent=1 // pred_fallthru
      _
    %v27 = vld [vmem:[%s0] sm:$0xff]
    %v28 = vld [vmem:[#allocation2] sm:$0xf]
    %v29 = vld [vmem:[#allocation2 + $0x10] sm:$0x1]
    %v30 = vld [vmem:[#allocation2 + $0x20] sm:$0xff]
    %v31 = vld [vmem:[#allocation2 + $0x28] sm:$0xff]
    %v32 = vld [vmem:[#allocation2 + $0x30] sm:$0xff]
    %v33 = vld [vmem:[#allocation2 + $0x38] sm:$0xff]
    %v34 = vld [vmem:[#allocation2 + $0x40] sm:$0xff]
    %v35 = vld [vmem:[#allocation2 + $0x48] sm:$0xff]
    %v36 = vld [vmem:[#allocation2 + $0x50] sm:$0xff]
    %v37 = vld [vmem:[#allocation2 + $0x58] sm:$0xff]
    %v38 = vld [vmem:[#allocation2 + $0x60] sm:$0xff]
    %v39 = vld [vmem:[#allocation2 + $0x68] sm:$0xff]
    %v40 = vld [vmem:[#allocation2 + $0x70] sm:$0xff]
    %v41 = vld [vmem:[#allocation2 + $0x78] sm:$0xff]
    %v42 = vld [vmem:[#allocation2 + $0x80] sm:$0xff]
    %v43 = vld [vmem:[#allocation2 + $0x88] sm:$0xff]
    %v44 = vld [vmem:[#allocation2 + $0x90] sm:$0xff]
    %v45 = vld [vmem:[#allocation2 + $0x98] sm:$0xff]
    %v46 = vld [vmem:[#allocation2 + $0xa0] sm:$0x1]
    %v47 = vld [vmem:[#allocation2 + $0xb0] sm:$0xff]
    %v48 = vld [vmem:[#allocation2 + $0xb8] sm:$0xff]
    %v49 = vld [vmem:[#allocation2 + $0xc0] sm:$0xff]
    %v50 = vld [vmem:[#allocation2 + $0xc8] sm:$0xff]
    %v51 = vld [vmem:[#allocation2 + $0xd0] sm:$0xff]
    %v52 = vld [vmem:[#allocation2 + $0xd8] sm:$0xff]
    %v53 = vld [vmem:[#allocation2 + $0xe0] sm:$0xff]
    %v54 = vld [vmem:[#allocation2 + $0xe8] sm:$0xff]
    %v55 = vld [vmem:[#allocation2 + $0xf0] sm:$0xff]
    %v56 = vld [vmem:[#allocation2 + $0xf8] sm:$0xff]
    %v57 = vld [vmem:[#allocation2 + $0x100] sm:$0xff]
    %v58 = vld [vmem:[#allocation2 + $0x108] sm:$0xff]
    %v59 = vld [vmem:[#allocation2 + $0x110] sm:$0xff]
    %v60 = vld [vmem:[#allocation2 + $0x118] sm:$0xff]
    %v61 = vld [vmem:[#allocation2 + $0x120] sm:$0xff]
    %v62 = vld [vmem:[#allocation2 + $0x128] sm:$0xff]
    %v63 = vld [vmem:[#allocation2 + $0x130] sm:$0x1]
    %v64 = vperm.slane %v29, 0
    %vm65 = vcmask 31744
    %v67 = vsel %vm65, %v27, 0
    %vm69 = vcmask 1043456
    %v71 = vsel %vm69, %v28, 0
    %73 = vmatpush.msra.mxu0 0.0
    %74 = vmatpush.msra.mxu0 0.0
    %75 = vmatpush.msra.mxu0 0.0
    %76 = vmatpush.msra.mxu0 0.0
    %77 = vmatpush.msra.mxu0 0.0
    %78 = vmatpush.msra.mxu0 0.0
    %79 = vmatpush.msra.mxu0 0.0
    %80 = vmatpush.msra.mxu0 0.0
    %81 = vmatpush.msra.mxu0 0.0
    %82 = vmatpush.msra.mxu0 0.0
    %83 = vmatpush.msra.mxu0 0.0
    %84 = vmatpush.msra.mxu0 0.0
    %85 = vmatpush.msra.mxu0 0.0
    %86 = vmatpush.msra.mxu0 0.0
    %87 = vmatpush.msra.mxu0 0.0
    %88 = vmatpush.msra.mxu0 %v71
    %89 = vmatmul.f32.gmra.mxu0 %v67
    %v90 = vpop.f32.mrf.mxu0
    %v91 = vadd.f32 %v64, %v90
    %92 = vdwg.mxu0
    %v93 = vmax.f32 %v91, 0.0
    %v94 = vperm.slane %v46, 0
    %95 = vmatpush.msra.mxu0 %v45
    %96 = vmatpush.msra.mxu0 %v44
    %97 = vmatpush.msra.mxu0 %v43
    %98 = vmatpush.msra.mxu0 %v42
    %99 = vmatpush.msra.mxu0 %v41
    %100 = vmatpush.msra.mxu0 %v40
    %101 = vmatpush.msra.mxu0 %v39
    %102 = vmatpush.msra.mxu0 %v38
    %103 = vmatpush.msra.mxu0 %v37
    %104 = vmatpush.msra.mxu0 %v36
    %105 = vmatpush.msra.mxu0 %v35
    %106 = vmatpush.msra.mxu0 %v34
    %107 = vmatpush.msra.mxu0 %v33
    %108 = vmatpush.msra.mxu0 %v32
    %109 = vmatpush.msra.mxu0 %v31
    %110 = vmatpush.msra.mxu0 %v30
    %111 = vmatmul.f32.gmra.mxu0 %v93
    %v112 = vpop.f32.mrf.mxu0
    %v113 = vadd.f32 %v94, %v112
    %114 = vdwg.mxu0
    %v115 = vmax.f32 %v113, 0.0
    %v116 = vperm.slane %v63, 0
    %117 = vmatpush.msra.mxu0 %v62
    %118 = vmatpush.msra.mxu0 %v61
    %119 = vmatpush.msra.mxu0 %v60
    %120 = vmatpush.msra.mxu0 %v59
    %121 = vmatpush.msra.mxu0 %v58
    %122 = vmatpush.msra.mxu0 %v57
    %123 = vmatpush.msra.mxu0 %v56
    %124 = vmatpush.msra.mxu0 %v55
    %125 = vmatpush.msra.mxu0 %v54
    %126 = vmatpush.msra.mxu0 %v53
    %127 = vmatpush.msra.mxu0 %v52
    %128 = vmatpush.msra.mxu0 %v51
    %129 = vmatpush.msra.mxu0 %v50
    %130 = vmatpush.msra.mxu0 %v49
    %131 = vmatpush.msra.mxu0 %v48
    %132 = vmatpush.msra.mxu0 %v47
    %133 = vmatmul.f32.gmra.mxu0 %v115
    %v134 = vpop.f32.mrf.mxu0
    %v135 = vadd.f32 %v116, %v134
    %136 = vdwg.mxu0
    %vm137 = vcmask 15360
    %138 = vst.msk [vmem:[%s2] sm:$0xff] %vm137, %v135
    // Predicated region
    $region14: #{cartpole_forward.1} parent=1 // pred_check
      _
    $region15: #{cartpole_forward.1} parent=1 // pred_check_branch
      %140 = sbr.rel (0) target = $region17
    $region16: #{cartpole_forward.1} parent=1 // pred_region
      _
    $region17: #{cartpole_forward.1} parent=1 // pred_fallthru
      _
    // Predicated region
    $region18: #{cartpole_forward.1} parent=1 // pred_check
      _
    $region19: #{cartpole_forward.1} parent=1 // pred_check_branch
      %142 = sbr.rel (0) target = $region21
    $region20: #{cartpole_forward.1} parent=1 // pred_region
      _
    $region21: #{cartpole_forward.1} parent=1 // pred_fallthru
      _
    %143 = vsyncpa [#allocation3], 1

</llo_original>
